<compile_context>
chip_gen: v7x
topology: tpu7x:2x2x1
jax: 0.10.0
libtpu: 0.0.40
codegen_flags: <defaults>
</compile_context>

<pallas_src>
import functools

import jax
import jax.numpy as jnp
from jax import lax
from jax.experimental import pallas as pl
from jax.experimental.pallas import tpu as pltpu

_EPS = 1e-6
_LANES = 128


def _default_block_rows():
    """Per-generation block size (rows of 128 lanes), sized to scoped VMEM."""
    try:
        kind = jax.devices()[0].device_kind.lower()
    except Exception:
        kind = ""
    if ("v7" in kind) or ("tpu7" in kind) or ("7x" in kind):
        return 8192   # 16 MiB of f32 input double-buffers, v7x scoped default 32 MiB
    if "v6" in kind:
        return 4096   # 8 MiB of input double-buffers
    return 2048       # v5e (16 MiB scoped default) and anything unknown


def _mse_log_kernel(pred_ref, gt_ref, out_ref, acc_sq, acc_cnt, *, tail_rows):
    i = pl.program_id(0)
    nsteps = pl.num_programs(0)
    block_rows = pred_ref.shape[0]

    @pl.when(i == 0)
    def _init():
        acc_sq[...] = jnp.zeros_like(acc_sq)
        acc_cnt[...] = jnp.zeros_like(acc_cnt)

    pred = jnp.maximum(pred_ref[...].astype(jnp.float32), 0.0)   # clamp(min=0)
    gt = gt_ref[...].astype(jnp.float32)
    # One log + exact divide instead of two logs (same math, halves EUP work).
    err = jnp.log((pred + _EPS) / (gt + _EPS))
    sq = err * err

    def _accum(mask):
        msq = jnp.where(mask, sq, 0.0)
        cnt = mask.astype(jnp.float32)
        # Fold (block_rows,128) -> (8,128) with layout-preserving reshape and
        # vreg-wise VPU adds; accumulator stays one vreg per quantity.
        acc_sq[...] += jnp.sum(msq.reshape(block_rows // 8, 8, _LANES), axis=0)
        acc_cnt[...] += jnp.sum(cnt.reshape(block_rows // 8, 8, _LANES), axis=0)

    if tail_rows == 0:
        # Every block is fully valid: no row masking anywhere.
        _accum(gt > 0.0)
    else:
        @pl.when(i < nsteps - 1)
        def _interior():          # fast path: full blocks
            _accum(gt > 0.0)

        @pl.when(i == nsteps - 1)
        def _tail():              # slow path: partial last block only
            row_ids = lax.broadcasted_iota(jnp.int32, (block_rows, _LANES), 0)
            _accum(jnp.logical_and(row_ids < tail_rows, gt > 0.0))

    @pl.when(i == nsteps - 1)
    def _finalize():
        s = jnp.sum(acc_sq[...])          # single-vreg XLU reduce
        n = jnp.sum(acc_cnt[...])
        row_idx = lax.broadcasted_iota(jnp.int32, (8, _LANES), 0)
        # row 0 of the (8,128) output block = sum of squared errors, row 1 = count.
        out_ref[...] = jnp.where(row_idx == 0, s,
                                 jnp.where(row_idx == 1, n, 0.0))


def mse_log_loss(prediction, gt, *, block_rows=None):
    """Masked mean squared log error; reduction done inside a Pallas kernel."""
    pred_flat = jnp.ravel(prediction)
    gt_flat = jnp.ravel(gt)
    # f32 / bf16 stream directly (per-tile upcast in VMEM); others go to f32.
    if pred_flat.dtype not in (jnp.float32, jnp.bfloat16):
        pred_flat = pred_flat.astype(jnp.float32)
    if gt_flat.dtype not in (jnp.float32, jnp.bfloat16):
        gt_flat = gt_flat.astype(jnp.float32)

    n_elems = pred_flat.shape[0]
    # Pad to a multiple of 8*128 only when statically needed (gt pads with
    # zeros, so padded elements are masked out by gt > 0).
    chunk = 8 * _LANES
    rem = n_elems % chunk
    if rem:
        pad = chunk - rem
        pred_flat = jnp.pad(pred_flat, (0, pad), constant_values=1.0)
        gt_flat = jnp.pad(gt_flat, (0, pad))

    rows = pred_flat.shape[0] // _LANES          # multiple of 8 by construction
    pred2d = pred_flat.reshape(rows, _LANES)
    gt2d = gt_flat.reshape(rows, _LANES)

    if block_rows is None:
        block_rows = _default_block_rows()
    block_rows = max(8, (block_rows // 8) * 8)
    block_rows = min(block_rows, rows)
    nsteps = pl.cdiv(rows, block_rows)
    tail_rows = rows % block_rows                # 0 => every block fully valid

    kernel = functools.partial(_mse_log_kernel, tail_rows=tail_rows)

    bytes_in = (pred2d.size * pred2d.dtype.itemsize
                + gt2d.size * gt2d.dtype.itemsize)
    n_padded = rows * _LANES
    cost = pl.CostEstimate(
        flops=8 * n_padded,
        transcendentals=2 * n_padded,
        bytes_accessed=bytes_in + 8 * _LANES * 4,
    )

    out = pl.pallas_call(
        kernel,
        out_shape=jax.ShapeDtypeStruct((8, _LANES), jnp.float32),
        grid_spec=pltpu.PrefetchScalarGridSpec(
            num_scalar_prefetch=0,
            grid=(nsteps,),
            in_specs=[
                pl.BlockSpec((block_rows, _LANES), lambda i: (i, 0)),
                pl.BlockSpec((block_rows, _LANES), lambda i: (i, 0)),
            ],
            out_specs=pl.BlockSpec((8, _LANES), lambda i: (0, 0)),
            scratch_shapes=[
                pltpu.VMEM((8, _LANES), jnp.float32),
                pltpu.VMEM((8, _LANES), jnp.float32),
            ],
        ),
        compiler_params=pltpu.CompilerParams(
            dimension_semantics=("arbitrary",),
        ),
        cost_estimate=cost,
    )(pred2d, gt2d)

    total_sum = out[0, 0]
    total_cnt = out[1, 0]
    # NaN when no gt > 0, matching torch.mean over an empty selection.
    return (total_sum / total_cnt).astype(jnp.float32)


def _reference(prediction, gt):
    pred = jnp.maximum(prediction.astype(jnp.float32), 0.0)
    gtf = gt.astype(jnp.float32)
    err = jnp.log(pred + _EPS) - jnp.log(gtf + _EPS)
    mask = gtf > 0.0
    return jnp.sum(jnp.where(mask, err * err, 0.0)) / jnp.sum(
        mask.astype(jnp.float32))


if __name__ == "__main__":
    key = jax.random.PRNGKey(0)

    def make_inputs(k, shape):
        k1, k2 = jax.random.split(k)
        pred = jax.random.uniform(k1, shape, jnp.float32, minval=-0.2, maxval=5.0)
        g = jax.random.uniform(k2, shape, jnp.float32, minval=-1.0, maxval=5.0)
        g = jnp.where(g > 0.5, g, 0.0)   # some invalid (zero) ground-truth px
        return pred, g

    # (shape, block_rows override). Small overrides exercise the multi-block
    # interior fast path and the partial-tail slow path at small sizes.
    cases = [
        ((2, 4, 16, 16), None),    # single full block, default block size
        ((2, 4, 128, 160), 64),    # 20 full blocks, no tail
        ((2, 4, 128, 130), 64),    # 16 full blocks + 16-row partial tail block
        ((3, 1, 7, 11), None),     # unaligned element count -> small pad path
    ]
    for shape, brows in cases:
        key, sub = jax.random.split(key)
        prediction, gtruth = make_inputs(sub, shape)
        loss = jax.block_until_ready(mse_log_loss(prediction, gtruth,
                                                  block_rows=brows))
        ref = jax.block_until_ready(_reference(prediction, gtruth))
        assert jnp.isfinite(loss), f"non-finite loss for {shape}"
        tol = 1e-4 * max(1.0, float(jnp.abs(ref)))
        assert abs(float(loss) - float(ref)) < tol, \
            f"mismatch for {shape} (block_rows={brows}): {loss} vs {ref}"
    print("KERNEL_OK")
</pallas_src>

<mosaic_0001>
module attributes {stable_mosaic.version = 11 : i64} {
  func.func @_mse_log_kernel(%arg0: i32, %arg1: memref<16x128xf32, #tpu.memory_space<vmem>>, %arg2: memref<16x128xf32, #tpu.memory_space<vmem>>, %arg3: memref<8x128xf32, #tpu.memory_space<vmem>>, %arg4: memref<8x128xf32, #tpu.memory_space<vmem>>, %arg5: memref<8x128xf32, #tpu.memory_space<vmem>>) attributes {dimension_semantics = [#tpu.dimension_semantics<arbitrary>], iteration_bounds = array<i64: 1>, scalar_prefetch = 0 : i64, scratch_operands = 2 : i64, tpu.core_type = #tpu.core_type<tc>, window_params = [{transform_indices = @transform_0, window_bounds = array<i64: 16, 128>}, {transform_indices = @transform_1, window_bounds = array<i64: 16, 128>}, {pipeline_mode = #tpu.pipeline_mode<synchronous>, transform_indices = @transform_2, window_bounds = array<i64: 8, 128>}]} {
    %c0_i32 = arith.constant 0 : i32
    %0 = arith.cmpi eq, %arg0, %c0_i32 : i32
    %1 = arith.extui %0 : i1 to i32
    %c0_i32_0 = arith.constant 0 : i32
    %2 = arith.cmpi ne, %1, %c0_i32_0 : i32
    scf.if %2 {
      %cst_20 = arith.constant 0.000000e+00 : f32
      %33 = vector.broadcast %cst_20 : f32 to vector<8x128xf32>
      %c0_21 = arith.constant 0 : index
      %c0_22 = arith.constant 0 : index
      %34 = vector.load %arg4[%c0_21, %c0_22] : memref<8x128xf32, #tpu.memory_space<vmem>>, vector<8x128xf32>
      tpu.vector_store %arg4[%c0_21, %c0_22], %33 {strides = array<i32>} : memref<8x128xf32, #tpu.memory_space<vmem>>, vector<8x128xf32>,
      %cst_23 = arith.constant 0.000000e+00 : f32
      %35 = vector.broadcast %cst_23 : f32 to vector<8x128xf32>
      %c0_24 = arith.constant 0 : index
      %c0_25 = arith.constant 0 : index
      %36 = vector.load %arg5[%c0_24, %c0_25] : memref<8x128xf32, #tpu.memory_space<vmem>>, vector<8x128xf32>
      tpu.vector_store %arg5[%c0_24, %c0_25], %35 {strides = array<i32>} : memref<8x128xf32, #tpu.memory_space<vmem>>, vector<8x128xf32>,
    } else {
    }
    %c0 = arith.constant 0 : index
    %c0_1 = arith.constant 0 : index
    %3 = vector.load %arg1[%c0, %c0_1] : memref<16x128xf32, #tpu.memory_space<vmem>>, vector<16x128xf32>
    %cst = arith.constant 0.000000e+00 : f32
    %4 = vector.broadcast %cst : f32 to vector<16x128xf32>
    %5 = arith.maximumf %3, %4 : vector<16x128xf32>
    %c0_2 = arith.constant 0 : index
    %c0_3 = arith.constant 0 : index
    %6 = vector.load %arg2[%c0_2, %c0_3] : memref<16x128xf32, #tpu.memory_space<vmem>>, vector<16x128xf32>
    %cst_4 = arith.constant 9.99999997E-7 : f32
    %7 = vector.broadcast %cst_4 : f32 to vector<16x128xf32>
    %8 = arith.addf %5, %7 : vector<16x128xf32>
    %cst_5 = arith.constant 9.99999997E-7 : f32
    %9 = vector.broadcast %cst_5 : f32 to vector<16x128xf32>
    %10 = arith.addf %6, %9 : vector<16x128xf32>
    %11 = arith.divf %8, %10 : vector<16x128xf32>
    %12 = math.log %11 : vector<16x128xf32>
    %13 = arith.mulf %12, %12 : vector<16x128xf32>
    %cst_6 = arith.constant 0.000000e+00 : f32
    %14 = vector.broadcast %cst_6 : f32 to vector<16x128xf32>
    %15 = arith.cmpf ogt, %6, %14 : vector<16x128xf32>
    %cst_7 = arith.constant 0.000000e+00 : f32
    %16 = vector.broadcast %cst_7 : f32 to vector<16x128xf32>
    %17 = arith.select %15, %13, %16 : vector<16x128xi1>, vector<16x128xf32>
    %18 = arith.extui %15 : vector<16x128xi1> to vector<16x128xi32>
    %19 = arith.sitofp %18 : vector<16x128xi32> to vector<16x128xf32>
    %c0_8 = arith.constant 0 : index
    %c0_9 = arith.constant 0 : index
    %20 = vector.load %arg4[%c0_8, %c0_9] : memref<8x128xf32, #tpu.memory_space<vmem>>, vector<8x128xf32>
    %21 = vector.shape_cast %17 : vector<16x128xf32> to vector<2x8x128xf32>
    %cst_10 = arith.constant dense<0.000000e+00> : vector<8x128xf32>
    %22 = vector.multi_reduction <add>, %21, %cst_10 [0] : vector<2x8x128xf32> to vector<8x128xf32>
    %23 = arith.addf %20, %22 : vector<8x128xf32>
    %c0_11 = arith.constant 0 : index
    %c0_12 = arith.constant 0 : index
    %24 = vector.load %arg4[%c0_11, %c0_12] : memref<8x128xf32, #tpu.memory_space<vmem>>, vector<8x128xf32>
    tpu.vector_store %arg4[%c0_11, %c0_12], %23 {strides = array<i32>} : memref<8x128xf32, #tpu.memory_space<vmem>>, vector<8x128xf32>,
    %c0_13 = arith.constant 0 : index
    %c0_14 = arith.constant 0 : index
    %25 = vector.load %arg5[%c0_13, %c0_14] : memref<8x128xf32, #tpu.memory_space<vmem>>, vector<8x128xf32>
    %26 = vector.shape_cast %19 : vector<16x128xf32> to vector<2x8x128xf32>
    %cst_15 = arith.constant dense<0.000000e+00> : vector<8x128xf32>
    %27 = vector.multi_reduction <add>, %26, %cst_15 [0] : vector<2x8x128xf32> to vector<8x128xf32>
    %28 = arith.addf %25, %27 : vector<8x128xf32>
    %c0_16 = arith.constant 0 : index
    %c0_17 = arith.constant 0 : index
    %29 = vector.load %arg5[%c0_16, %c0_17] : memref<8x128xf32, #tpu.memory_space<vmem>>, vector<8x128xf32>
    tpu.vector_store %arg5[%c0_16, %c0_17], %28 {strides = array<i32>} : memref<8x128xf32, #tpu.memory_space<vmem>>, vector<8x128xf32>,
    %c0_i32_18 = arith.constant 0 : i32
    %30 = arith.cmpi eq, %arg0, %c0_i32_18 : i32
    %31 = arith.extui %30 : i1 to i32
    %c0_i32_19 = arith.constant 0 : i32
    %32 = arith.cmpi ne, %31, %c0_i32_19 : i32
    scf.if %32 {
      %c0_20 = arith.constant 0 : index
      %c0_21 = arith.constant 0 : index
      %33 = vector.load %arg4[%c0_20, %c0_21] : memref<8x128xf32, #tpu.memory_space<vmem>>, vector<8x128xf32>
      %34 = vector.shape_cast %33 : vector<8x128xf32> to vector<1x8x128xf32>
      %cst_22 = arith.constant dense<0.000000e+00> : vector<1xf32>
      %35 = vector.multi_reduction <add>, %34, %cst_22 [1, 2] : vector<1x8x128xf32> to vector<1xf32>
      %36 = vector.shape_cast %35 : vector<1xf32> to vector<1x1x1xf32>
      %37 = vector.extract %36[0, 0, 0] : f32 from vector<1x1x1xf32>
      %c0_23 = arith.constant 0 : index
      %c0_24 = arith.constant 0 : index
      %38 = vector.load %arg5[%c0_23, %c0_24] : memref<8x128xf32, #tpu.memory_space<vmem>>, vector<8x128xf32>
      %39 = vector.shape_cast %38 : vector<8x128xf32> to vector<1x8x128xf32>
      %cst_25 = arith.constant dense<0.000000e+00> : vector<1xf32>
      %40 = vector.multi_reduction <add>, %39, %cst_25 [1, 2] : vector<1x8x128xf32> to vector<1xf32>
      %41 = vector.shape_cast %40 : vector<1xf32> to vector<1x1x1xf32>
      %42 = vector.extract %41[0, 0, 0] : f32 from vector<1x1x1xf32>
      %43 = tpu.iota {dimensions = array<i32: 0>} : vector<8x128xi32>
      %c0_i32_26 = arith.constant 0 : i32
      %44 = vector.broadcast %c0_i32_26 : i32 to vector<8x128xi32>
      %45 = arith.cmpi eq, %43, %44 : vector<8x128xi32>
      %c1_i32 = arith.constant 1 : i32
      %46 = vector.broadcast %c1_i32 : i32 to vector<8x128xi32>
      %47 = arith.cmpi eq, %43, %46 : vector<8x128xi32>
      %cst_27 = arith.constant 0.000000e+00 : f32
      %48 = vector.broadcast %42 : f32 to vector<8x128xf32>
      %49 = vector.broadcast %cst_27 : f32 to vector<8x128xf32>
      %50 = arith.select %47, %48, %49 : vector<8x128xi1>, vector<8x128xf32>
      %51 = vector.broadcast %37 : f32 to vector<8x128xf32>
      %52 = arith.select %45, %51, %50 : vector<8x128xi1>, vector<8x128xf32>
      %c0_28 = arith.constant 0 : index
      %c0_29 = arith.constant 0 : index
      %53 = vector.load %arg3[%c0_28, %c0_29] : memref<8x128xf32, #tpu.memory_space<vmem>>, vector<8x128xf32>
      tpu.vector_store %arg3[%c0_28, %c0_29], %52 {strides = array<i32>} : memref<8x128xf32, #tpu.memory_space<vmem>>, vector<8x128xf32>,
    } else {
    }
    return
  }
  func.func @transform_0(%arg0: i32) -> (i32, i32) {
    %c0_i32 = arith.constant 0 : i32
    %c0_i32_0 = arith.constant 0 : i32
    return %arg0, %c0_i32 : i32, i32
  }
  func.func @transform_1(%arg0: i32) -> (i32, i32) {
    %c0_i32 = arith.constant 0 : i32
    %c0_i32_0 = arith.constant 0 : i32
    return %arg0, %c0_i32 : i32, i32
  }
  func.func @transform_2(%arg0: i32) -> (i32, i32) {
    %c0_i32 = arith.constant 0 : i32
    %c0_i32_0 = arith.constant 0 : i32
    %c0_i32_1 = arith.constant 0 : i32
    return %c0_i32, %c0_i32_0 : i32, i32
  }
}

</mosaic_0001>

<llo_original>
// kernel: tpu_custom_call.1
$region0: #{tpu_custom_call.1}
  #allocation0 [shape = 'u32[]', space=smem, size = 0x4, offset = 0x4, fixed_abs, tag = 'smem constant byte address 0x4 - core index']
  #allocation1 [shape = 'u32[144,128]{1,0:T(1,128)}', space=vmem, size = 0x12000, scoped, tag = 'internal scratch']
  #allocation2 [shape = 'f32[8,128]{1,0:T(8,128)}', space=vmem, size = 0x1000, scoped, tag = 'scratch operand']
  #allocation3 [shape = 'f32[8,128]{1,0:T(8,128)}', space=vmem, size = 0x1000, scoped, tag = 'scratch operand']
  %s0 = inlined_call_operand.hbm [shape: f32[16,128], index: 0, kind: input, shape index: {}]
  %s1 = inlined_call_operand.hbm [shape: f32[16,128], index: 1, kind: input, shape index: {}]
  %s2 = inlined_call_operand.hbm [shape: f32[8,128], index: 2, kind: output, shape index: {}]
  %s3 = sld [smem:[#allocation0]]
  $region34: #{tpu_custom_call.1} parent=0
    _
  %s5 = ssub.s32 1, %s3
  %s6 = scalar_select 0, %s5, %s3
  $region1: #{tpu_custom_call.1} parent=0
    #allocation4 [shape = 'u8[8192]{0}', space=vmem, size = 0x2000, scoped, tag = 'input window, operand 0, single buffered']
    #allocation5 [shape = 's32[1]{0}', space=sflag, size = 0x4, scoped, tag = 'scoped memory for tpu_custom_call.1']
    #allocation6 [shape = 's32[1]{0}', space=sflag, size = 0x4, scoped, tag = 'scoped memory for tpu_custom_call.1']
    #allocation7 [shape = 'u8[8192]{0}', space=vmem, size = 0x2000, scoped, tag = 'input window, operand 1, single buffered']
    #allocation8 [shape = 's32[1]{0}', space=sflag, size = 0x4, scoped, tag = 'scoped memory for tpu_custom_call.1']
    #allocation9 [shape = 'u8[4096]{0}', space=vmem, size = 0x1000, scoped, tag = 'output window, operand 0, single buffered']
    %7 = vsyncpa [#allocation5], 0
    %8 = vsyncpa [#allocation8], 0
    %9 = vsyncpa [#allocation6], 0
    // Predicated region
    $region2: #{tpu_custom_call.1} parent=1 // pred_check
      _
    $region3: #{tpu_custom_call.1} parent=1 // pred_check_branch
      %11 = sbr.rel (0) target = $region5
    $region4: #{tpu_custom_call.1} parent=1 // pred_region
      %s13 = ssub.s32 256, 256
      %14 = vsyncadd [#allocation5], %s13
      %s15 = sshll.u32 [#allocation4], 4
      %s16 = int_to_ptr.vmem [resolvable:$true] %s15
      %21 = dma.hbm_to_vmem [thread:$0]  %s0, 256, %s16, [#allocation5], 128, 128, 8
    $region5: #{tpu_custom_call.1} parent=1 // pred_fallthru
      _
    // Predicated region
    $region6: #{tpu_custom_call.1} parent=1 // pred_check
      _
    $region7: #{tpu_custom_call.1} parent=1 // pred_check_branch
      %23 = sbr.rel (0) target = $region9
    $region8: #{tpu_custom_call.1} parent=1 // pred_region
      %s25 = ssub.s32 256, 256
      %26 = vsyncadd [#allocation8], %s25
      %s27 = sshll.u32 [#allocation7], 4
      %s28 = int_to_ptr.vmem [resolvable:$true] %s27
      %33 = dma.hbm_to_vmem [thread:$0]  %s1, 256, %s28, [#allocation8], 128, 128, 8
    $region9: #{tpu_custom_call.1} parent=1 // pred_fallthru
      _
    // Predicated region
    $region10: #{tpu_custom_call.1} parent=1 // pred_check
      _
    $region11: #{tpu_custom_call.1} parent=1 // pred_check_branch
      %35 = sbr.rel (0) target = $region13
    $region12: #{tpu_custom_call.1} parent=1 // pred_region
      %36 = dma.done [#allocation5], 256
    $region13: #{tpu_custom_call.1} parent=1 // pred_fallthru
      _
    // Predicated region
    $region14: #{tpu_custom_call.1} parent=1 // pred_check
      _
    $region15: #{tpu_custom_call.1} parent=1 // pred_check_branch
      %38 = sbr.rel (0) target = $region17
    $region16: #{tpu_custom_call.1} parent=1 // pred_region
      %39 = dma.done [#allocation8], 256
    $region17: #{tpu_custom_call.1} parent=1 // pred_fallthru
      _
    %p40 = scmp.eq.s32.totalorder 0, 0
    // Predicated region
    $region18: #{tpu_custom_call.1} parent=1 // pred_check
      %p41 = pneg %p40
    $region19: #{tpu_custom_call.1} parent=1 // pred_check_branch
      %43 = sbr.rel (%p41) target = $region21
    $region20: #{tpu_custom_call.1} parent=1 // pred_region
      %44 = vst [vmem:[#allocation2] sm:$0xff] 0.0
      %45 = vst [vmem:[#allocation3] sm:$0xff] 0.0
    $region21: #{tpu_custom_call.1} parent=1 // pred_fallthru
      _
    %v46 = vld [vmem:[#allocation4] sm:$0xff]
    %v47 = vld [vmem:[#allocation4 + $0x8] sm:$0xff]
    %v48 = vmax.f32 %v46, 0.0
    %v49 = vmax.f32 %v47, 0.0
    %v50 = vld [vmem:[#allocation7] sm:$0xff]
    %v51 = vld [vmem:[#allocation7 + $0x8] sm:$0xff]
    %v52 = vadd.f32 %v48, 1e-06
    %v53 = vadd.f32 %v49, 1e-06
    %v54 = vadd.f32 %v50, 1e-06
    %v55 = vadd.f32 %v51, 1e-06
    %v56 = vrcp.pop %v54
    %v57 = vmul.f32 %v52, %v56
    %v58 = vrcp.pop %v55
    %v59 = vmul.f32 %v53, %v58
    %v60 = vlog2.pop %v57
    %v61 = vmul.f32 %v60, 0.6931472
    %v62 = vlog2.pop %v59
    %v63 = vmul.f32 %v62, 0.6931472
    %v64 = vmul.f32 %v61, %v61
    %v65 = vmul.f32 %v63, %v63
    %vm66 = vcmp.gt.f32.partialorder %v50, 0.0
    %vm67 = vcmp.gt.f32.partialorder %v51, 0.0
    %v68 = vsel %vm66, %v64, 0.0
    %v69 = vsel %vm67, %v65, 0.0
    %v70 = vsel %vm66, 1, 0
    %v71 = vsel %vm67, 1, 0
    %v72 = vcvt.s32.f32 %v70
    %v73 = vcvt.s32.f32 %v71
    %v74 = vld [vmem:[#allocation2] sm:$0xff]
    %v75 = vadd.f32 %v68, %v69
    %v76 = vadd.f32 %v74, %v75
    %77 = vst [vmem:[#allocation2] sm:$0xff] %v76
    %v78 = vld [vmem:[#allocation3] sm:$0xff]
    %v79 = vadd.f32 %v72, %v73
    %v80 = vadd.f32 %v78, %v79
    %81 = vst [vmem:[#allocation3] sm:$0xff] %v80
    // Predicated region
    $region22: #{tpu_custom_call.1} parent=1 // pred_check
      %p82 = pneg %p40
    $region23: #{tpu_custom_call.1} parent=1 // pred_check_branch
      %84 = sbr.rel (%p82) target = $region25
    $region24: #{tpu_custom_call.1} parent=1 // pred_region
      %v85 = vld [vmem:[#allocation2] sm:$0xff]
      %86 = vadd.xlane.f32.xlu0 %v85
      %v87 = vpop.xlane.xlu0 %86
      %v88 = vrot.slane %v87, 4
      %v89 = vadd.f32 %v87, %v88
      %v90 = vrot.slane %v89, 2
      %v91 = vadd.f32 %v89, %v90
      %v92 = vrot.slane %v91, 1
      %v93 = vadd.f32 %v91, %v92
      %s94 = vtos %v93
      %v95 = vld [vmem:[#allocation3] sm:$0xff]
      %96 = vadd.xlane.f32.xlu0 %v95
      %v97 = vpop.xlane.xlu0 %96
      %v98 = vrot.slane %v97, 4
      %v99 = vadd.f32 %v97, %v98
      %v100 = vrot.slane %v99, 2
      %v101 = vadd.f32 %v99, %v100
      %v102 = vrot.slane %v101, 1
      %v103 = vadd.f32 %v101, %v102
      %s104 = vtos %v103
      %v105 = vlaneseq
      %v106 = vshrl.u32 %v105, 7
      %vm107 = vcmp.eq.s32.totalorder %v106, 0
      %vm108 = vcmp.eq.s32.totalorder %v106, 1
      %v109 = vstv %s104
      %v110 = vsel %vm108, %v109, 0.0
      %v111 = vstv %s94
      %v112 = vsel %vm107, %v111, %v110
      %113 = vst [vmem:[#allocation9] sm:$0xff] %v112
    $region25: #{tpu_custom_call.1} parent=1 // pred_fallthru
      _
    // Predicated region
    $region26: #{tpu_custom_call.1} parent=1 // pred_check
      _
    $region27: #{tpu_custom_call.1} parent=1 // pred_check_branch
      %115 = sbr.rel (0) target = $region29
    $region28: #{tpu_custom_call.1} parent=1 // pred_region
      %s117 = ssub.s32 128, 128
      %118 = vsyncadd [#allocation6], %s117
      %s120 = sshll.u32 [#allocation9], 4
      %s121 = int_to_ptr.vmem [resolvable:$true] %s120
      %123 = dma.vmem_to_hbm [thread:$0]  %s121, 128, %s2, [#allocation6]
    $region29: #{tpu_custom_call.1} parent=1 // pred_fallthru
      _
    // Predicated region
    $region30: #{tpu_custom_call.1} parent=1 // pred_check
      _
    $region31: #{tpu_custom_call.1} parent=1 // pred_check_branch
      %125 = sbr.rel (0) target = $region33
    $region32: #{tpu_custom_call.1} parent=1 // pred_region
      %126 = dma.done [#allocation6], 128
    $region33: #{tpu_custom_call.1} parent=1 // pred_fallthru
      _
    %127 = vsyncpa [#allocation5], 1
    %128 = vsyncpa [#allocation8], 1
    %129 = vsyncpa [#allocation6], 1

</llo_original>
